<compile_context>
chip_gen: v6e
topology: v6e:2x2x1
jax: 0.10.0
libtpu: 0.0.40
codegen_flags: <defaults>
</compile_context>

<pallas_src>
import jax
import jax.numpy as jnp
from jax.experimental import pallas as pl
from jax.experimental.pallas import tpu as pltpu


def _round_up(x, m):
    return ((x + m - 1) // m) * m


# ---------------------------------------------------------------------------
# Pallas kernel: fused MLP forward for one batch tile (batch on lanes)
# ---------------------------------------------------------------------------
def chanflow_mlp_kernel(x_ref,          # [1, tile_b]           (y-coords, batch on lanes)
                        w0_ref, b0_ref,  # [40, 1], [40, 1]
                        w1t_ref, b1_ref,  # [40, 40] (= W1.T), [40, 1]
                        w2t_ref, b2_ref,  # [40, 40] (= W2.T), [40, 1]
                        w3_ref, b3_ref,  # [40, 1], [1, 1]
                        o_ref):          # [1, tile_b]
    x = x_ref[...]                                           # [1, tile_b]

    # Layer 0 (K=1): outer product as a VPU broadcast multiply, no MXU.
    h = jnp.tanh(w0_ref[...] * x + b0_ref[...])              # [40, tile_b]

    # Hidden layers 1 & 2: 40x40 matmuls on the MXU (f32 accumulate).
    h = jnp.tanh(
        jnp.dot(w1t_ref[...], h, preferred_element_type=jnp.float32) + b1_ref[...]
    )                                                        # [40, tile_b]
    h = jnp.tanh(
        jnp.dot(w2t_ref[...], h, preferred_element_type=jnp.float32) + b2_ref[...]
    )                                                        # [40, tile_b]

    # Output layer (out_dim=1): dot-product as elementwise multiply + sublane reduce.
    out = jnp.sum(w3_ref[...] * h, axis=0, keepdims=True) + b3_ref[...]   # [1, tile_b]
    o_ref[...] = out.astype(o_ref.dtype)


# ---------------------------------------------------------------------------
# Wrapper: layout plumbing (transpose / pad), grid & BlockSpecs, pallas_call
# ---------------------------------------------------------------------------
def chanflow_forward(x, params, *, tile_b=None):
    """x: [B, 1] float32.  params: list of (W, b) with W:[fan_in, fan_out], b:[1, fan_out]."""
    B, in_dim = x.shape
    assert in_dim == 1, "Chanflow hard-codes in_dim=1"
    (w0, b0), (w1, b1), (w2, b2), (w3, b3) = params
    num_units = w0.shape[1]
    out_dim = w3.shape[1]
    assert out_dim == 1, "Chanflow hard-codes out_dim=1"

    # Lane tile for the batch axis: multiple of 128; big tiles amortize the
    # ~0.35us per-grid-step overhead. Caller can override (e.g. to split work
    # across both v7x TensorCores for small batches).
    if tile_b is None:
        tile_b = min(_round_up(B, 128), 2048)
    tile_b = max(128, _round_up(tile_b, 128))
    Bp = _round_up(B, tile_b)

    # Transposed, lane-dense layout: batch on lanes, features on sublanes.
    xT = jnp.pad(x.T, ((0, 0), (0, Bp - B)))      # [1, Bp]
    w0c = w0.T                                    # [num_units, 1]
    b0c = b0.T                                    # [num_units, 1]
    w1t = w1.T                                    # [num_units, num_units]  (out, in)
    b1c = b1.T                                    # [num_units, 1]
    w2t = w2.T
    b2c = b2.T
    w3c = w3                                      # [num_units, 1]
    b3c = b3.T                                    # [1, 1]

    grid = (Bp // tile_b,)

    def full_spec(arr):
        return pl.BlockSpec(arr.shape, lambda i: (0, 0))

    param_bytes = sum(int(a.size) * a.dtype.itemsize
                      for a in (w0c, b0c, w1t, b1c, w2t, b2c, w3c, b3c))
    cost = pl.CostEstimate(
        flops=2 * Bp * (num_units + 2 * num_units * num_units + num_units),
        transcendentals=3 * Bp * num_units,
        bytes_accessed=4 * (Bp * in_dim + Bp * out_dim) + param_bytes,
    )

    out_t = pl.pallas_call(
        chanflow_mlp_kernel,
        out_shape=jax.ShapeDtypeStruct((1, Bp), jnp.float32),
        grid=grid,
        in_specs=[
            pl.BlockSpec((1, tile_b), lambda i: (0, i)),   # x tile (batch on lanes)
            full_spec(w0c), full_spec(b0c),
            full_spec(w1t), full_spec(b1c),
            full_spec(w2t), full_spec(b2c),
            full_spec(w3c), full_spec(b3c),
        ],
        out_specs=pl.BlockSpec((1, tile_b), lambda i: (0, i)),
        compiler_params=pltpu.CompilerParams(
            dimension_semantics=("parallel",),
        ),
        cost_estimate=cost,
    )(xT, w0c, b0c, w1t, b1c, w2t, b2c, w3c, b3c)

    # Back to the module's [B, 1] layout (slice off batch padding).
    return out_t[:, :B].T


# ---------------------------------------------------------------------------
# Deterministic parameter initialization (PyTorch-Linear-style uniform bounds)
# ---------------------------------------------------------------------------
def init_params(key, in_dim=1, num_units=40, num_layers=2, out_dim=1):
    dims = [(in_dim, num_units)]
    dims += [(num_units, num_units)] * num_layers
    dims += [(num_units, out_dim)]
    params = []
    for (fan_in, fan_out) in dims:
        key, kw, kb = jax.random.split(key, 3)
        bound = 1.0 / (fan_in ** 0.5)
        # Stored as [fan_in, fan_out] so y = x @ W + b matches torch.nn.Linear
        w = jax.random.uniform(kw, (fan_in, fan_out), jnp.float32, -bound, bound)
        b = jax.random.uniform(kb, (1, fan_out), jnp.float32, -bound, bound)
        params.append((w, b))
    return params


def reference_forward(x, params):
    """Plain-JAX reference matching Chanflow.forward semantics."""
    h = x
    for (w, b) in params[:-1]:
        h = jnp.tanh(h @ w + b)
    w, b = params[-1]
    return h @ w + b


if __name__ == "__main__":
    key = jax.random.PRNGKey(0)
    kparams, kx = jax.random.split(key)

    # Module defaults: in_dim=1, num_units=40, num_layers=2, out_dim=1.
    B, IN_DIM = 256, 1
    params = init_params(kparams, in_dim=IN_DIM, num_units=40,
                         num_layers=2, out_dim=1)
    # y in [ymin, ymax] = [-1, 1], shape [B, 1] like the training batches.
    x = jax.random.uniform(kx, (B, IN_DIM), jnp.float32, -1.0, 1.0)

    # tile_b=128 -> grid=(2,), so both v7x TensorCores get a tile for this demo
    # batch; for production batches the auto default picks up-to-2048-lane tiles.
    out = chanflow_forward(x, params, tile_b=128)
    out = jax.block_until_ready(out)

    # sanity check against the pure-JAX reference
    ref = reference_forward(x, params)
    assert out.shape == (B, 1)
    assert jnp.allclose(out, ref, atol=1e-5, rtol=1e-5), \
        f"max abs err {jnp.max(jnp.abs(out - ref))}"

    print("KERNEL_OK")
</pallas_src>

<mosaic_0001>
module attributes {stable_mosaic.version = 11 : i64} {
  func.func @chanflow_mlp_kernel(%arg0: i32, %arg1: memref<1x128xf32, #tpu.memory_space<vmem>>, %arg2: memref<40x1xf32, #tpu.memory_space<vmem>>, %arg3: memref<40x1xf32, #tpu.memory_space<vmem>>, %arg4: memref<40x40xf32, #tpu.memory_space<vmem>>, %arg5: memref<40x1xf32, #tpu.memory_space<vmem>>, %arg6: memref<40x40xf32, #tpu.memory_space<vmem>>, %arg7: memref<40x1xf32, #tpu.memory_space<vmem>>, %arg8: memref<40x1xf32, #tpu.memory_space<vmem>>, %arg9: memref<1x1xf32, #tpu.memory_space<vmem>>, %arg10: memref<1x128xf32, #tpu.memory_space<vmem>>) attributes {dimension_semantics = [#tpu.dimension_semantics<parallel>], iteration_bounds = array<i64: 2>, scalar_prefetch = 0 : i64, scratch_operands = 0 : i64, tpu.core_type = #tpu.core_type<tc>, window_params = [{transform_indices = @transform_0, window_bounds = array<i64: 1, 128>}, {pipeline_mode = #tpu.pipeline_mode<synchronous>, transform_indices = @transform_1, window_bounds = array<i64: 40, 1>}, {pipeline_mode = #tpu.pipeline_mode<synchronous>, transform_indices = @transform_2, window_bounds = array<i64: 40, 1>}, {pipeline_mode = #tpu.pipeline_mode<synchronous>, transform_indices = @transform_3, window_bounds = array<i64: 40, 40>}, {pipeline_mode = #tpu.pipeline_mode<synchronous>, transform_indices = @transform_4, window_bounds = array<i64: 40, 1>}, {pipeline_mode = #tpu.pipeline_mode<synchronous>, transform_indices = @transform_5, window_bounds = array<i64: 40, 40>}, {pipeline_mode = #tpu.pipeline_mode<synchronous>, transform_indices = @transform_6, window_bounds = array<i64: 40, 1>}, {pipeline_mode = #tpu.pipeline_mode<synchronous>, transform_indices = @transform_7, window_bounds = array<i64: 40, 1>}, {pipeline_mode = #tpu.pipeline_mode<synchronous>, transform_indices = @transform_8, window_bounds = array<i64: 1, 1>}, {transform_indices = @transform_9, window_bounds = array<i64: 1, 128>}]} {
    %c0 = arith.constant 0 : index
    %c0_0 = arith.constant 0 : index
    %0 = vector.load %arg1[%c0, %c0_0] : memref<1x128xf32, #tpu.memory_space<vmem>>, vector<1x128xf32>
    %c0_1 = arith.constant 0 : index
    %c0_2 = arith.constant 0 : index
    %1 = vector.load %arg2[%c0_1, %c0_2] : memref<40x1xf32, #tpu.memory_space<vmem>>, vector<40x1xf32>
    %2 = vector.broadcast %1 : vector<40x1xf32> to vector<40x128xf32>
    %3 = vector.broadcast %0 : vector<1x128xf32> to vector<40x128xf32>
    %4 = arith.mulf %2, %3 : vector<40x128xf32>
    %c0_3 = arith.constant 0 : index
    %c0_4 = arith.constant 0 : index
    %5 = vector.load %arg3[%c0_3, %c0_4] : memref<40x1xf32, #tpu.memory_space<vmem>>, vector<40x1xf32>
    %6 = vector.broadcast %5 : vector<40x1xf32> to vector<40x128xf32>
    %7 = arith.addf %4, %6 : vector<40x128xf32>
    %8 = math.tanh %7 : vector<40x128xf32>
    %c0_5 = arith.constant 0 : index
    %c0_6 = arith.constant 0 : index
    %9 = vector.load %arg4[%c0_5, %c0_6] : memref<40x40xf32, #tpu.memory_space<vmem>>, vector<40x40xf32>
    %cst = arith.constant dense<0.000000e+00> : vector<40x128xf32>
    %10 = tpu.matmul %9, %8, %cst {dimension_numbers = #tpu.dot_dimension_numbers<[1], [0], [0], [1], [0, 0, 1, 1], [], []>} : vector<40x40xf32>, vector<40x128xf32>, vector<40x128xf32> -> vector<40x128xf32>
    %c0_7 = arith.constant 0 : index
    %c0_8 = arith.constant 0 : index
    %11 = vector.load %arg5[%c0_7, %c0_8] : memref<40x1xf32, #tpu.memory_space<vmem>>, vector<40x1xf32>
    %12 = vector.broadcast %11 : vector<40x1xf32> to vector<40x128xf32>
    %13 = arith.addf %10, %12 : vector<40x128xf32>
    %14 = math.tanh %13 : vector<40x128xf32>
    %c0_9 = arith.constant 0 : index
    %c0_10 = arith.constant 0 : index
    %15 = vector.load %arg6[%c0_9, %c0_10] : memref<40x40xf32, #tpu.memory_space<vmem>>, vector<40x40xf32>
    %cst_11 = arith.constant dense<0.000000e+00> : vector<40x128xf32>
    %16 = tpu.matmul %15, %14, %cst_11 {dimension_numbers = #tpu.dot_dimension_numbers<[1], [0], [0], [1], [0, 0, 1, 1], [], []>} : vector<40x40xf32>, vector<40x128xf32>, vector<40x128xf32> -> vector<40x128xf32>
    %c0_12 = arith.constant 0 : index
    %c0_13 = arith.constant 0 : index
    %17 = vector.load %arg7[%c0_12, %c0_13] : memref<40x1xf32, #tpu.memory_space<vmem>>, vector<40x1xf32>
    %18 = vector.broadcast %17 : vector<40x1xf32> to vector<40x128xf32>
    %19 = arith.addf %16, %18 : vector<40x128xf32>
    %20 = math.tanh %19 : vector<40x128xf32>
    %c0_14 = arith.constant 0 : index
    %c0_15 = arith.constant 0 : index
    %21 = vector.load %arg8[%c0_14, %c0_15] : memref<40x1xf32, #tpu.memory_space<vmem>>, vector<40x1xf32>
    %22 = vector.broadcast %21 : vector<40x1xf32> to vector<40x128xf32>
    %23 = arith.mulf %22, %20 : vector<40x128xf32>
    %cst_16 = arith.constant dense<0.000000e+00> : vector<128xf32>
    %24 = vector.multi_reduction <add>, %23, %cst_16 [0] : vector<40x128xf32> to vector<128xf32>
    %25 = vector.shape_cast %24 : vector<128xf32> to vector<1x128xf32>
    %c0_17 = arith.constant 0 : index
    %c0_18 = arith.constant 0 : index
    %26 = vector.load %arg9[%c0_17, %c0_18] : memref<1x1xf32, #tpu.memory_space<vmem>>, vector<1x1xf32>
    %27 = vector.broadcast %26 : vector<1x1xf32> to vector<1x128xf32>
    %28 = arith.addf %25, %27 : vector<1x128xf32>
    %c0_19 = arith.constant 0 : index
    %c0_20 = arith.constant 0 : index
    %29 = vector.load %arg10[%c0_19, %c0_20] : memref<1x128xf32, #tpu.memory_space<vmem>>, vector<1x128xf32>
    tpu.vector_store %arg10[%c0_19, %c0_20], %28 {strides = array<i32>} : memref<1x128xf32, #tpu.memory_space<vmem>>, vector<1x128xf32>,
    return
  }
  func.func @transform_0(%arg0: i32) -> (i32, i32) {
    %c0_i32 = arith.constant 0 : i32
    %c0_i32_0 = arith.constant 0 : i32
    return %c0_i32, %arg0 : i32, i32
  }
  func.func @transform_1(%arg0: i32) -> (i32, i32) {
    %c0_i32 = arith.constant 0 : i32
    %c0_i32_0 = arith.constant 0 : i32
    %c0_i32_1 = arith.constant 0 : i32
    return %c0_i32, %c0_i32_0 : i32, i32
  }
  func.func @transform_2(%arg0: i32) -> (i32, i32) {
    %c0_i32 = arith.constant 0 : i32
    %c0_i32_0 = arith.constant 0 : i32
    %c0_i32_1 = arith.constant 0 : i32
    return %c0_i32, %c0_i32_0 : i32, i32
  }
  func.func @transform_3(%arg0: i32) -> (i32, i32) {
    %c0_i32 = arith.constant 0 : i32
    %c0_i32_0 = arith.constant 0 : i32
    %c0_i32_1 = arith.constant 0 : i32
    return %c0_i32, %c0_i32_0 : i32, i32
  }
  func.func @transform_4(%arg0: i32) -> (i32, i32) {
    %c0_i32 = arith.constant 0 : i32
    %c0_i32_0 = arith.constant 0 : i32
    %c0_i32_1 = arith.constant 0 : i32
    return %c0_i32, %c0_i32_0 : i32, i32
  }
  func.func @transform_5(%arg0: i32) -> (i32, i32) {
    %c0_i32 = arith.constant 0 : i32
    %c0_i32_0 = arith.constant 0 : i32
    %c0_i32_1 = arith.constant 0 : i32
    return %c0_i32, %c0_i32_0 : i32, i32
  }
  func.func @transform_6(%arg0: i32) -> (i32, i32) {
    %c0_i32 = arith.constant 0 : i32
    %c0_i32_0 = arith.constant 0 : i32
    %c0_i32_1 = arith.constant 0 : i32
    return %c0_i32, %c0_i32_0 : i32, i32
  }
  func.func @transform_7(%arg0: i32) -> (i32, i32) {
    %c0_i32 = arith.constant 0 : i32
    %c0_i32_0 = arith.constant 0 : i32
    %c0_i32_1 = arith.constant 0 : i32
    return %c0_i32, %c0_i32_0 : i32, i32
  }
  func.func @transform_8(%arg0: i32) -> (i32, i32) {
    %c0_i32 = arith.constant 0 : i32
    %c0_i32_0 = arith.constant 0 : i32
    %c0_i32_1 = arith.constant 0 : i32
    return %c0_i32, %c0_i32_0 : i32, i32
  }
  func.func @transform_9(%arg0: i32) -> (i32, i32) {
    %c0_i32 = arith.constant 0 : i32
    %c0_i32_0 = arith.constant 0 : i32
    return %c0_i32, %arg0 : i32, i32
  }
}

</mosaic_0001>

<llo_original>
// kernel: tpu_custom_call.1
$region0: #{tpu_custom_call.1}
  #allocation0 [shape = 'u32[]', space=smem, size = 0x4, offset = 0x4, fixed_abs, tag = 'smem constant byte address 0x4 - core index']
  #allocation1 [shape = 'u32[144,128]{1,0:T(1,128)}', space=vmem, size = 0x12000, scoped, tag = 'internal scratch']
  #allocation2 [shape = 'f32[1,1]{1,0:T(1,128)S(1)}', space=vmem, size = 0x200, scoped, tag = 'scoped memory for tpu_custom_call.1']
  %s0 = inlined_call_operand.vmem [shape: f32[1,256], index: 0, kind: input, shape index: {}]
  %s1 = inlined_call_operand.vmem [shape: f32[40,1], index: 1, kind: input, shape index: {}]
  %s2 = inlined_call_operand.vmem [shape: f32[40,1], index: 2, kind: input, shape index: {}]
  %s3 = inlined_call_operand.vmem [shape: f32[40,40], index: 3, kind: input, shape index: {}]
  %s4 = inlined_call_operand.vmem [shape: f32[40,1], index: 4, kind: input, shape index: {}]
  %s5 = inlined_call_operand.vmem [shape: f32[40,40], index: 5, kind: input, shape index: {}]
  %s6 = inlined_call_operand.vmem [shape: f32[40,1], index: 6, kind: input, shape index: {}]
  %s7 = inlined_call_operand.vmem [shape: f32[40,1], index: 7, kind: input, shape index: {}]
  %s8 = inlined_call_operand.<no memory space> [shape: f32[1,1], index: 8, kind: input, shape index: {}]
  %s9 = inlined_call_operand.hbm [shape: f32[1,256], index: 9, kind: output, shape index: {}]
  %s10 = sld [smem:[#allocation0]]
  $region69: #{tpu_custom_call.1} parent=0
    _
  %s12 = ssub.s32 1, %s10
  %s13 = scalar_select 0, %s12, %s10
  %v14 = vstv %s8
  %15 = vst [vmem:[#allocation2] sm:$0x1] %v14
  $region1: #{tpu_custom_call.1} parent=0
    #allocation3 [shape = 'u8[1024]{0}', space=vmem, size = 0x400, scoped, tag = 'output window, operand 0']
    #allocation4 [shape = 's32[2]{0}', space=sflag, size = 0x8, scoped, tag = 'scoped memory for tpu_custom_call.1']
    %16 = vsyncpa [#allocation4], 0
    %s17 = scalar_lea.sflag [#allocation4], 1
    %18 = vsyncpa %s17, 0
    loop: start=0, step=1, limit=4
    $region2: #{tpu_custom_call.1} parent=1 // loop_pre_header
      _
    $region3: #{tpu_custom_call.1} parent=1 // loop_header
      %s20 = sphi 0, %s24
      %p21 = scmp.ge.s32.totalorder %s20, 4
      %s30 = sphi 0, %s32
      %s33 = sphi 0, %s30
      %s34 = sphi 0, %s33
      %s50 = sphi 0, %s34
      %s54 = sphi 0, %s54
      %s56 = sphi 0, %s54
      %s57 = sphi 0, %s56
      %s71 = sphi 0, %s57
      %s75 = sphi 0, %s75
      %s77 = sphi 0, %s75
      %s78 = sphi 0, %s77
      %s92 = sphi 0, %s78
      %s96 = sphi 0, %s96
      %s98 = sphi 0, %s96
      %s99 = sphi 0, %s98
      %s113 = sphi 0, %s99
      %s117 = sphi 0, %s117
      %s119 = sphi 0, %s117
      %s120 = sphi 0, %s119
      %s134 = sphi 0, %s120
      %s138 = sphi 0, %s138
      %s140 = sphi 0, %s138
      %s141 = sphi 0, %s140
      %s155 = sphi 0, %s141
      %s159 = sphi 0, %s159
      %s161 = sphi 0, %s159
      %s162 = sphi 0, %s161
      %s176 = sphi 0, %s162
      %s180 = sphi 0, %s180
      %s182 = sphi 0, %s180
      %s183 = sphi 0, %s182
      %s197 = sphi 0, %s183
      %s201 = sphi 0, %s201
      %s203 = sphi 0, %s201
      %s204 = sphi 0, %s203
      %s218 = sphi 0, %s204
      %s224 = sphi 0, %s226
      %s227 = sphi 0, %s224
      %s228 = sphi 0, %s227
      %s244 = sphi 0, %s228
    $region4: #{tpu_custom_call.1} parent=1 // loop_header_branch
      %23 = sbr.rel (%p21) target = $region8
    $region5: #{tpu_custom_call.1} parent=1 // loop_body
      %s25 = ssub.s32 %s20, 1
      %s26 = ssub.s32 %s20, 2
      %s27 = sadd.s32 %s20, 1
      %s28 = ssub.s32 %s20, %s27
      %p29 = scmp.eq.s32.totalorder %s28, 0
      %s31 = sadd.s32 %s30, 1
      %s32 = scalar_select %p29, %s30, %s31
      %p35 = pneg %p29
      %p36 = scmp.eq.s32.totalorder %s20, 1
      %p37 = por %p35, %p36
      %p38 = scmp.ne.s32.totalorder %s30, %s33
      %p39 = scmp.eq.s32.totalorder %s20, 0
      %p40 = por %p38, %p39
      %p41 = scmp.ne.s32.totalorder %s30, %s33
      %p42 = scmp.eq.s32.totalorder %s25, 1
      %p43 = por %p41, %p42
      %p44 = scmp.ne.s32.totalorder %s33, %s34
      %p45 = scmp.eq.s32.totalorder %s25, 0
      %p46 = por %p44, %p45
      %p47 = scmp.ne.s32.totalorder %s33, %s34
      %p48 = scmp.eq.s32.totalorder %s26, 1
      %p49 = por %p47, %p48
      %p51 = scmp.ne.s32.totalorder %s34, %s50
      %p52 = scmp.eq.s32.totalorder %s26, 0
      %p53 = por %p51, %p52
      %s55 = sadd.s32 %s54, 1
      %p58 = scmp.eq.s32.totalorder %s20, 1
      %p59 = scmp.ne.s32.totalorder %s54, %s56
      %p60 = scmp.eq.s32.totalorder %s20, 0
      %p61 = por %p59, %p60
      %p62 = scmp.ne.s32.totalorder %s54, %s56
      %p63 = scmp.eq.s32.totalorder %s25, 1
      %p64 = por %p62, %p63
      %p65 = scmp.ne.s32.totalorder %s56, %s57
      %p66 = scmp.eq.s32.totalorder %s25, 0
      %p67 = por %p65, %p66
      %p68 = scmp.ne.s32.totalorder %s56, %s57
      %p69 = scmp.eq.s32.totalorder %s26, 1
      %p70 = por %p68, %p69
      %p72 = scmp.ne.s32.totalorder %s57, %s71
      %p73 = scmp.eq.s32.totalorder %s26, 0
      %p74 = por %p72, %p73
      %s76 = sadd.s32 %s75, 1
      %p79 = scmp.eq.s32.totalorder %s20, 1
      %p80 = scmp.ne.s32.totalorder %s75, %s77
      %p81 = scmp.eq.s32.totalorder %s20, 0
      %p82 = por %p80, %p81
      %p83 = scmp.ne.s32.totalorder %s75, %s77
      %p84 = scmp.eq.s32.totalorder %s25, 1
      %p85 = por %p83, %p84
      %p86 = scmp.ne.s32.totalorder %s77, %s78
      %p87 = scmp.eq.s32.totalorder %s25, 0
      %p88 = por %p86, %p87
      %p89 = scmp.ne.s32.totalorder %s77, %s78
      %p90 = scmp.eq.s32.totalorder %s26, 1
      %p91 = por %p89, %p90
      %p93 = scmp.ne.s32.totalorder %s78, %s92
      %p94 = scmp.eq.s32.totalorder %s26, 0
      %p95 = por %p93, %p94
      %s97 = sadd.s32 %s96, 1
      %p100 = scmp.eq.s32.totalorder %s20, 1
      %p101 = scmp.ne.s32.totalorder %s96, %s98
      %p102 = scmp.eq.s32.totalorder %s20, 0
      %p103 = por %p101, %p102
      %p104 = scmp.ne.s32.totalorder %s96, %s98
      %p105 = scmp.eq.s32.totalorder %s25, 1
      %p106 = por %p104, %p105
      %p107 = scmp.ne.s32.totalorder %s98, %s99
      %p108 = scmp.eq.s32.totalorder %s25, 0
      %p109 = por %p107, %p108
      %p110 = scmp.ne.s32.totalorder %s98, %s99
      %p111 = scmp.eq.s32.totalorder %s26, 1
      %p112 = por %p110, %p111
      %p114 = scmp.ne.s32.totalorder %s99, %s113
      %p115 = scmp.eq.s32.totalorder %s26, 0
      %p116 = por %p114, %p115
      %s118 = sadd.s32 %s117, 1
      %p121 = scmp.eq.s32.totalorder %s20, 1
      %p122 = scmp.ne.s32.totalorder %s117, %s119
      %p123 = scmp.eq.s32.totalorder %s20, 0
      %p124 = por %p122, %p123
      %p125 = scmp.ne.s32.totalorder %s117, %s119
      %p126 = scmp.eq.s32.totalorder %s25, 1
      %p127 = por %p125, %p126
      %p128 = scmp.ne.s32.totalorder %s119, %s120
      %p129 = scmp.eq.s32.totalorder %s25, 0
      %p130 = por %p128, %p129
      %p131 = scmp.ne.s32.totalorder %s119, %s120
      %p132 = scmp.eq.s32.totalorder %s26, 1
      %p133 = por %p131, %p132
      %p135 = scmp.ne.s32.totalorder %s120, %s134
      %p136 = scmp.eq.s32.totalorder %s26, 0
      %p137 = por %p135, %p136
      %s139 = sadd.s32 %s138, 1
      %p142 = scmp.eq.s32.totalorder %s20, 1
      %p143 = scmp.ne.s32.totalorder %s138, %s140
      %p144 = scmp.eq.s32.totalorder %s20, 0
      %p145 = por %p143, %p144
      %p146 = scmp.ne.s32.totalorder %s138, %s140
      %p147 = scmp.eq.s32.totalorder %s25, 1
      %p148 = por %p146, %p147
      %p149 = scmp.ne.s32.totalorder %s140, %s141
      %p150 = scmp.eq.s32.totalorder %s25, 0
      %p151 = por %p149, %p150
      %p152 = scmp.ne.s32.totalorder %s140, %s141
      %p153 = scmp.eq.s32.totalorder %s26, 1
      %p154 = por %p152, %p153
      %p156 = scmp.ne.s32.totalorder %s141, %s155
      %p157 = scmp.eq.s32.totalorder %s26, 0
      %p158 = por %p156, %p157
      %s160 = sadd.s32 %s159, 1
      %p163 = scmp.eq.s32.totalorder %s20, 1
      %p164 = scmp.ne.s32.totalorder %s159, %s161
      %p165 = scmp.eq.s32.totalorder %s20, 0
      %p166 = por %p164, %p165
      %p167 = scmp.ne.s32.totalorder %s159, %s161
      %p168 = scmp.eq.s32.totalorder %s25, 1
      %p169 = por %p167, %p168
      %p170 = scmp.ne.s32.totalorder %s161, %s162
      %p171 = scmp.eq.s32.totalorder %s25, 0
      %p172 = por %p170, %p171
      %p173 = scmp.ne.s32.totalorder %s161, %s162
      %p174 = scmp.eq.s32.totalorder %s26, 1
      %p175 = por %p173, %p174
      %p177 = scmp.ne.s32.totalorder %s162, %s176
      %p178 = scmp.eq.s32.totalorder %s26, 0
      %p179 = por %p177, %p178
      %s181 = sadd.s32 %s180, 1
      %p184 = scmp.eq.s32.totalorder %s20, 1
      %p185 = scmp.ne.s32.totalorder %s180, %s182
      %p186 = scmp.eq.s32.totalorder %s20, 0
      %p187 = por %p185, %p186
      %p188 = scmp.ne.s32.totalorder %s180, %s182
      %p189 = scmp.eq.s32.totalorder %s25, 1
      %p190 = por %p188, %p189
      %p191 = scmp.ne.s32.totalorder %s182, %s183
      %p192 = scmp.eq.s32.totalorder %s25, 0
      %p193 = por %p191, %p192
      %p194 = scmp.ne.s32.totalorder %s182, %s183
      %p195 = scmp.eq.s32.totalorder %s26, 1
      %p196 = por %p194, %p195
      %p198 = scmp.ne.s32.totalorder %s183, %s197
      %p199 = scmp.eq.s32.totalorder %s26, 0
      %p200 = por %p198, %p199
      %s202 = sadd.s32 %s201, 1
      %p205 = scmp.eq.s32.totalorder %s20, 1
      %p206 = scmp.ne.s32.totalorder %s201, %s203
      %p207 = scmp.eq.s32.totalorder %s20, 0
      %p208 = por %p206, %p207
      %p209 = scmp.ne.s32.totalorder %s201, %s203
      %p210 = scmp.eq.s32.totalorder %s25, 1
      %p211 = por %p209, %p210
      %p212 = scmp.ne.s32.totalorder %s203, %s204
      %p213 = scmp.eq.s32.totalorder %s25, 0
      %p214 = por %p212, %p213
      %p215 = scmp.ne.s32.totalorder %s203, %s204
      %p216 = scmp.eq.s32.totalorder %s26, 1
      %p217 = por %p215, %p216
      %p219 = scmp.ne.s32.totalorder %s204, %s218
      %p220 = scmp.eq.s32.totalorder %s26, 0
      %p221 = por %p219, %p220
      %s222 = ssub.s32 %s20, %s27
      %p223 = scmp.eq.s32.totalorder %s222, 0
      %s225 = sadd.s32 %s224, 1
      %s226 = scalar_select %p223, %s224, %s225
      %p229 = pneg %p223
      %p230 = scmp.eq.s32.totalorder %s20, 1
      %p231 = por %p229, %p230
      %p232 = scmp.ne.s32.totalorder %s224, %s227
      %p233 = scmp.eq.s32.totalorder %s20, 0
      %p234 = por %p232, %p233
      %p235 = scmp.ne.s32.totalorder %s224, %s227
      %p236 = scmp.eq.s32.totalorder %s25, 1
      %p237 = por %p235, %p236
      %p238 = scmp.ne.s32.totalorder %s227, %s228
      %p239 = scmp.eq.s32.totalorder %s25, 0
      %p240 = por %p238, %p239
      %p241 = scmp.ne.s32.totalorder %s227, %s228
      %p242 = scmp.eq.s32.totalorder %s26, 1
      %p243 = por %p241, %p242
      %p245 = scmp.ne.s32.totalorder %s228, %s244
      %p246 = scmp.eq.s32.totalorder %s26, 0
      %p247 = por %p245, %p246
      %p248 = scmp.le.s32.totalorder 1, %s20
      %p249 = scmp.lt.s32.totalorder %s20, 3
      %p250 = pnand %p248, %p249
      %p251 = pneg %p250
      // Predicated region
      $region9: #{tpu_custom_call.1} parent=5 // pred_check
        _
      $region10: #{tpu_custom_call.1} parent=5 // pred_check_branch
        %253 = sbr.rel (%p250) target = $region12
      $region11: #{tpu_custom_call.1} parent=5 // pred_region
        %s254 = ssub.s32 %s20, 1
        // Predicated region
        $region13: #{tpu_custom_call.1} parent=11 // pred_check
          %p255 = pneg %p67
        $region14: #{tpu_custom_call.1} parent=11 // pred_check_branch
          %257 = sbr.rel (%p255) target = $region16
        $region15: #{tpu_custom_call.1} parent=11 // pred_region
          _
        $region16: #{tpu_custom_call.1} parent=11 // pred_fallthru
          _
        // Predicated region
        $region17: #{tpu_custom_call.1} parent=11 // pred_check
          %p258 = pneg %p88
        $region18: #{tpu_custom_call.1} parent=11 // pred_check_branch
          %260 = sbr.rel (%p258) target = $region20
        $region19: #{tpu_custom_call.1} parent=11 // pred_region
          _
        $region20: #{tpu_custom_call.1} parent=11 // pred_fallthru
          _
        // Predicated region
        $region21: #{tpu_custom_call.1} parent=11 // pred_check
          %p261 = pneg %p109
        $region22: #{tpu_custom_call.1} parent=11 // pred_check_branch
          %263 = sbr.rel (%p261) target = $region24
        $region23: #{tpu_custom_call.1} parent=11 // pred_region
          _
        $region24: #{tpu_custom_call.1} parent=11 // pred_fallthru
          _
        // Predicated region
        $region25: #{tpu_custom_call.1} parent=11 // pred_check
          %p264 = pneg %p130
        $region26: #{tpu_custom_call.1} parent=11 // pred_check_branch
          %266 = sbr.rel (%p264) target = $region28
        $region27: #{tpu_custom_call.1} parent=11 // pred_region
          _
        $region28: #{tpu_custom_call.1} parent=11 // pred_fallthru
          _
        // Predicated region
        $region29: #{tpu_custom_call.1} parent=11 // pred_check
          %p267 = pneg %p151
        $region30: #{tpu_custom_call.1} parent=11 // pred_check_branch
          %269 = sbr.rel (%p267) target = $region32
        $region31: #{tpu_custom_call.1} parent=11 // pred_region
          _
        $region32: #{tpu_custom_call.1} parent=11 // pred_fallthru
          _
        // Predicated region
        $region33: #{tpu_custom_call.1} parent=11 // pred_check
          %p270 = pneg %p172
        $region34: #{tpu_custom_call.1} parent=11 // pred_check_branch
          %272 = sbr.rel (%p270) target = $region36
        $region35: #{tpu_custom_call.1} parent=11 // pred_region
          _
        $region36: #{tpu_custom_call.1} parent=11 // pred_fallthru
          _
        // Predicated region
        $region37: #{tpu_custom_call.1} parent=11 // pred_check
          %p273 = pneg %p193
        $region38: #{tpu_custom_call.1} parent=11 // pred_check_branch
          %275 = sbr.rel (%p273) target = $region40
        $region39: #{tpu_custom_call.1} parent=11 // pred_region
          _
        $region40: #{tpu_custom_call.1} parent=11 // pred_fallthru
          _
        // Predicated region
        $region41: #{tpu_custom_call.1} parent=11 // pred_check
          %p276 = pneg %p214
        $region42: #{tpu_custom_call.1} parent=11 // pred_check_branch
          %278 = sbr.rel (%p276) target = $region44
        $region43: #{tpu_custom_call.1} parent=11 // pred_region
          _
        $region44: #{tpu_custom_call.1} parent=11 // pred_fallthru
          _
      $region12: #{tpu_custom_call.1} parent=5 // pred_fallthru
        _
      %p279 = scmp.lt.s32.totalorder %s20, 2
      // Predicated region
      $region45: #{tpu_custom_call.1} parent=5 // pred_check
        %p280 = pneg %p279
      $region46: #{tpu_custom_call.1} parent=5 // pred_check_branch
        %282 = sbr.rel (%p280) target = $region48
      $region47: #{tpu_custom_call.1} parent=5 // pred_region
        // Predicated region
        $region49: #{tpu_custom_call.1} parent=47 // pred_check
          %p283 = pneg %p40
        $region50: #{tpu_custom_call.1} parent=47 // pred_check_branch
          %285 = sbr.rel (%p283) target = $region52
        $region51: #{tpu_custom_call.1} parent=47 // pred_region
          %p286 = scmp.lt.s32.totalorder %s20, 1
          %s287 = scalar_select %p286, %s20, 1
          %s288 = scalar_lea.vmem %s0, %s287
        $region52: #{tpu_custom_call.1} parent=47 // pred_fallthru
          _
      $region48: #{tpu_custom_call.1} parent=5 // pred_fallthru
        _
      %p289 = scmp.le.s32.totalorder 1, %s20
      %p290 = scmp.lt.s32.totalorder %s20, 3
      %p291 = pnand %p289, %p290
      %p292 = pneg %p291
      // Predicated region
      $region53: #{tpu_custom_call.1} parent=5 // pred_check
        _
      $region54: #{tpu_custom_call.1} parent=5 // pred_check_branch
        %294 = sbr.rel (%p291) target = $region56
      $region55: #{tpu_custom_call.1} parent=5 // pred_region
        %s295 = ssub.s32 %s20, 1
        %p296 = scmp.lt.s32.totalorder %s25, 1
        %s297 = scalar_select %p296, %s25, 1
        %s298 = scalar_lea.vmem %s0, %s297
        %p299 = pneg %p46
        %p300 = pneg %p43
        %p301 = pneg %p67
        %p302 = pneg %p64
        %p303 = pneg %p88
        %p304 = pneg %p85
        %p305 = pneg %p109
        %p306 = pneg %p106
        %p307 = pneg %p130
        %p308 = pneg %p127
        %p309 = pneg %p151
        %p310 = pneg %p148
        %p311 = pneg %p172
        %p312 = pneg %p169
        %p313 = pneg %p193
        %p314 = pneg %p190
        %p315 = pneg %p214
        %p316 = pneg %p211
        %p317 = pneg %p240
        %p318 = pneg %p237
        %s319 = sand.u32 %s227, 1
        %s320 = scalar_lea.sflag [#allocation4], %s319
        %s321 = sand.u32 %s227, 1
        %s322 = scalar_lea.vmem [#allocation3], %s321
        %p323 = scmp.lt.s32.totalorder %s25, 1
        %s324 = scalar_select %p323, %s25, 1
        %s325 = scalar_lea.vmem %s0, %s324
        %v326 = vld [vmem:[%s325] sm:$0x1]
        %v327 = vld [vmem:[%s1] sm:$0xff]
        %v328 = vld [vmem:[%s1 + $0x8] sm:$0xff]
        %v329 = vld [vmem:[%s1 + $0x10] sm:$0xff]
        %v330 = vld [vmem:[%s1 + $0x18] sm:$0xff]
        %v331 = vld [vmem:[%s1 + $0x20] sm:$0xff]
        %333 = vset.pattern.permute.xlu0 0
        %334 = vperm.xlu0 %333, %v327
        %v335 = vpop.permute.xlu0 %334
        %338 = vset.pattern.permute.xlu0 0
        %339 = vperm.xlu0 %338, %v328
        %v340 = vpop.permute.xlu0 %339
        %343 = vset.pattern.permute.xlu0 0
        %344 = vperm.xlu0 %343, %v329
        %v345 = vpop.permute.xlu0 %344
        %348 = vset.pattern.permute.xlu0 0
        %349 = vperm.xlu0 %348, %v330
        %v350 = vpop.permute.xlu0 %349
        %353 = vset.pattern.permute.xlu0 0
        %354 = vperm.xlu0 %353, %v331
        %v355 = vpop.permute.xlu0 %354
        %v358 = vlaneseq
        %v359 = vshrl.u32 %v358, 7
        %v360 = vsub.s32 0, %v359
        %v361 = vrot.slane %v326, %v360
        %v363 = vmul.f32 %v335, %v361
        %v364 = vmul.f32 %v340, %v361
        %v365 = vmul.f32 %v345, %v361
        %v366 = vmul.f32 %v350, %v361
        %v367 = vmul.f32 %v355, %v361
        %v368 = vld [vmem:[%s2] sm:$0xff]
        %v369 = vld [vmem:[%s2 + $0x8] sm:$0xff]
        %v370 = vld [vmem:[%s2 + $0x10] sm:$0xff]
        %v371 = vld [vmem:[%s2 + $0x18] sm:$0xff]
        %v372 = vld [vmem:[%s2 + $0x20] sm:$0xff]
        %374 = vset.pattern.permute.xlu0 0
        %375 = vperm.xlu0 %374, %v368
        %v376 = vpop.permute.xlu0 %375
        %379 = vset.pattern.permute.xlu0 0
        %380 = vperm.xlu0 %379, %v369
        %v381 = vpop.permute.xlu0 %380
        %384 = vset.pattern.permute.xlu0 0
        %385 = vperm.xlu0 %384, %v370
        %v386 = vpop.permute.xlu0 %385
        %389 = vset.pattern.permute.xlu0 0
        %390 = vperm.xlu0 %389, %v371
        %v391 = vpop.permute.xlu0 %390
        %394 = vset.pattern.permute.xlu0 0
        %395 = vperm.xlu0 %394, %v372
        %v396 = vpop.permute.xlu0 %395
        %v398 = vadd.f32 %v363, %v376
        %v399 = vadd.f32 %v364, %v381
        %v400 = vadd.f32 %v365, %v386
        %v401 = vadd.f32 %v366, %v391
        %v402 = vadd.f32 %v367, %v396
        %v403 = vtanh.pop %v398
        %v404 = vtanh.pop %v399
        %v405 = vtanh.pop %v400
        %v406 = vtanh.pop %v401
        %v407 = vtanh.pop %v402
        %v408 = vld [vmem:[%s3] sm:$0xff]
        %v409 = vld [vmem:[%s3 + $0x8] sm:$0xff]
        %v410 = vld [vmem:[%s3 + $0x10] sm:$0xff]
        %v411 = vld [vmem:[%s3 + $0x18] sm:$0xff]
        %v412 = vld [vmem:[%s3 + $0x20] sm:$0xff]
        %v413 = vld [vmem:[%s4] sm:$0xff]
        %v414 = vld [vmem:[%s4 + $0x8] sm:$0xff]
        %v415 = vld [vmem:[%s4 + $0x10] sm:$0xff]
        %v416 = vld [vmem:[%s4 + $0x18] sm:$0xff]
        %v417 = vld [vmem:[%s4 + $0x20] sm:$0xff]
        %419 = vset.pattern.permute.xlu0 0
        %420 = vperm.xlu0 %419, %v413
        %v421 = vpop.permute.xlu0 %420
        %424 = vset.pattern.permute.xlu0 0
        %425 = vperm.xlu0 %424, %v414
        %v426 = vpop.permute.xlu0 %425
        %429 = vset.pattern.permute.xlu0 0
        %430 = vperm.xlu0 %429, %v415
        %v431 = vpop.permute.xlu0 %430
        %434 = vset.pattern.permute.xlu0 0
        %435 = vperm.xlu0 %434, %v416
        %v436 = vpop.permute.xlu0 %435
        %439 = vset.pattern.permute.xlu0 0
        %440 = vperm.xlu0 %439, %v417
        %v441 = vpop.permute.xlu0 %440
        %vm443 = vcmask 326656
        %v445 = vsel %vm443, %v408, 0
        %v448 = vsel %vm443, %v409, 0
        %v451 = vsel %vm443, %v410, 0
        %v454 = vsel %vm443, %v411, 0
        %v457 = vsel %vm443, %v412, 0
        %459 = vmatprep.subr.mxu0 0.0
        %460 = vmatpush1.msra.mxu0 0.0
        %461 = vmatprep.subr.mxu0 0.0
        %462 = vmatpush1.msra.mxu0 0.0
        %463 = vmatprep.subr.mxu0 0.0
        %464 = vmatpush1.msra.mxu0 0.0
        %465 = vmatprep.subr.mxu0 0.0
        %466 = vmatpush1.msra.mxu0 0.0
        %467 = vmatprep.subr.mxu0 0.0
        %468 = vmatpush1.msra.mxu0 0.0
        %469 = vmatprep.subr.mxu0 0.0
        %470 = vmatpush1.msra.mxu0 0.0
        %471 = vmatprep.subr.mxu0 0.0
        %472 = vmatpush1.msra.mxu0 0.0
        %473 = vmatprep.subr.mxu0 0.0
        %474 = vmatpush1.msra.mxu0 0.0
        %475 = vmatprep.subr.mxu0 0.0
        %476 = vmatpush1.msra.mxu0 0.0
        %477 = vmatprep.subr.mxu0 0.0
        %478 = vmatpush1.msra.mxu0 0.0
        %479 = vmatprep.subr.mxu0 0.0
        %480 = vmatpush1.msra.mxu0 0.0
        %481 = vmatprep.subr.mxu0 0.0
        %482 = vmatpush1.msra.mxu0 %v407
        %483 = vmatprep.subr.mxu0 0.0
        %484 = vmatpush1.msra.mxu0 %v406
        %485 = vmatprep.subr.mxu0 0.0
        %486 = vmatpush1.msra.mxu0 %v405
        %487 = vmatprep.subr.mxu0 0.0
        %488 = vmatpush1.msra.mxu0 %v404
        %489 = vmatprep.subr.mxu0 0.0
        %490 = vmatpush1.msra.mxu0 %v403
        %491 = vmatprep.subr.mxu0 0.0
        %492 = vmatpush2.msra.mxu0 0.0
        %493 = vmatprep.subr.mxu0 0.0
        %494 = vmatpush2.msra.mxu0 0.0
        %495 = vmatprep.subr.mxu0 0.0
        %496 = vmatpush2.msra.mxu0 0.0
        %497 = vmatprep.subr.mxu0 0.0
        %498 = vmatpush2.msra.mxu0 0.0
        %499 = vmatprep.subr.mxu0 0.0
        %500 = vmatpush2.msra.mxu0 0.0
        %501 = vmatprep.subr.mxu0 0.0
        %502 = vmatpush2.msra.mxu0 0.0
        %503 = vmatprep.subr.mxu0 0.0
        %504 = vmatpush2.msra.mxu0 0.0
        %505 = vmatprep.subr.mxu0 0.0
        %506 = vmatpush2.msra.mxu0 0.0
        %507 = vmatprep.subr.mxu0 0.0
        %508 = vmatpush2.msra.mxu0 0.0
        %509 = vmatprep.subr.mxu0 0.0
        %510 = vmatpush2.msra.mxu0 0.0
        %511 = vmatprep.subr.mxu0 0.0
        %512 = vmatpush2.msra.mxu0 0.0
        %513 = vmatprep.subr.mxu0 0.0
        %514 = vmatpush2.msra.mxu0 0.0
        %515 = vmatprep.subr.mxu0 0.0
        %516 = vmatpush2.msra.mxu0 0.0
        %517 = vmatprep.subr.mxu0 0.0
        %518 = vmatpush2.msra.mxu0 0.0
        %519 = vmatprep.subr.mxu0 0.0
        %520 = vmatpush2.msra.mxu0 0.0
        %521 = vmatprep.subr.mxu0 0.0
        %522 = vmatpush2.msra.mxu0 0.0
        %523 = vmatprep.mubr.f32.mxu0 0.0
        %524 = vmatmul.mubr.f32.gmra.mxu0 %v445
        %v525 = vpop.f32.mrf.mxu0
        %v526 = vadd.f32 %v421, %v525
        %v527 = vpop.f32.mrf.mxu0
        %528 = vmatprep.mubr.f32.mxu0 0.0
        %529 = vmatmul.mubr.f32.gmra.mxu0 %v448
        %v530 = vpop.f32.mrf.mxu0
        %v531 = vadd.f32 %v426, %v530
        %v532 = vpop.f32.mrf.mxu0
        %533 = vmatprep.mubr.f32.mxu0 0.0
        %534 = vmatmul.mubr.f32.gmra.mxu0 %v451
        %v535 = vpop.f32.mrf.mxu0
        %v536 = vadd.f32 %v431, %v535
        %v537 = vpop.f32.mrf.mxu0
        %538 = vmatprep.mubr.f32.mxu0 0.0
        %539 = vmatmul.mubr.f32.gmra.mxu0 %v454
        %v540 = vpop.f32.mrf.mxu0
        %v541 = vadd.f32 %v436, %v540
        %v542 = vpop.f32.mrf.mxu0
        %543 = vmatprep.mubr.f32.mxu0 0.0
        %544 = vmatmul.mubr.f32.gmra.mxu0 %v457
        %v545 = vpop.f32.mrf.mxu0
        %v546 = vadd.f32 %v441, %v545
        %v547 = vpop.f32.mrf.mxu0
        %548 = vdwg.mxu0
        %v549 = vtanh.pop %v526
        %v550 = vtanh.pop %v531
        %v551 = vtanh.pop %v536
        %v552 = vtanh.pop %v541
        %v553 = vtanh.pop %v546
        %v554 = vld [vmem:[%s5] sm:$0xff]
        %v555 = vld [vmem:[%s5 + $0x8] sm:$0xff]
        %v556 = vld [vmem:[%s5 + $0x10] sm:$0xff]
        %v557 = vld [vmem:[%s5 + $0x18] sm:$0xff]
        %v558 = vld [vmem:[%s5 + $0x20] sm:$0xff]
        %v559 = vld [vmem:[%s6] sm:$0xff]
        %v560 = vld [vmem:[%s6 + $0x8] sm:$0xff]
        %v561 = vld [vmem:[%s6 + $0x10] sm:$0xff]
        %v562 = vld [vmem:[%s6 + $0x18] sm:$0xff]
        %v563 = vld [vmem:[%s6 + $0x20] sm:$0xff]
        %565 = vset.pattern.permute.xlu0 0
        %566 = vperm.xlu0 %565, %v559
        %v567 = vpop.permute.xlu0 %566
        %570 = vset.pattern.permute.xlu0 0
        %571 = vperm.xlu0 %570, %v560
        %v572 = vpop.permute.xlu0 %571
        %575 = vset.pattern.permute.xlu0 0
        %576 = vperm.xlu0 %575, %v561
        %v577 = vpop.permute.xlu0 %576
        %580 = vset.pattern.permute.xlu0 0
        %581 = vperm.xlu0 %580, %v562
        %v582 = vpop.permute.xlu0 %581
        %585 = vset.pattern.permute.xlu0 0
        %586 = vperm.xlu0 %585, %v563
        %v587 = vpop.permute.xlu0 %586
        %v590 = vsel %vm443, %v554, 0
        %v593 = vsel %vm443, %v555, 0
        %v596 = vsel %vm443, %v556, 0
        %v599 = vsel %vm443, %v557, 0
        %v602 = vsel %vm443, %v558, 0
        %604 = vmatprep.subr.mxu0 0.0
        %605 = vmatpush1.msra.mxu0 0.0
        %606 = vmatprep.subr.mxu0 0.0
        %607 = vmatpush1.msra.mxu0 0.0
        %608 = vmatprep.subr.mxu0 0.0
        %609 = vmatpush1.msra.mxu0 0.0
        %610 = vmatprep.subr.mxu0 0.0
        %611 = vmatpush1.msra.mxu0 0.0
        %612 = vmatprep.subr.mxu0 0.0
        %613 = vmatpush1.msra.mxu0 0.0
        %614 = vmatprep.subr.mxu0 0.0
        %615 = vmatpush1.msra.mxu0 0.0
        %616 = vmatprep.subr.mxu0 0.0
        %617 = vmatpush1.msra.mxu0 0.0
        %618 = vmatprep.subr.mxu0 0.0
        %619 = vmatpush1.msra.mxu0 0.0
        %620 = vmatprep.subr.mxu0 0.0
        %621 = vmatpush1.msra.mxu0 0.0
        %622 = vmatprep.subr.mxu0 0.0
        %623 = vmatpush1.msra.mxu0 0.0
        %624 = vmatprep.subr.mxu0 0.0
        %625 = vmatpush1.msra.mxu0 0.0
        %626 = vmatprep.subr.mxu0 0.0
        %627 = vmatpush1.msra.mxu0 %v553
        %628 = vmatprep.subr.mxu0 0.0
        %629 = vmatpush1.msra.mxu0 %v552
        %630 = vmatprep.subr.mxu0 0.0
        %631 = vmatpush1.msra.mxu0 %v551
        %632 = vmatprep.subr.mxu0 0.0
        %633 = vmatpush1.msra.mxu0 %v550
        %634 = vmatprep.subr.mxu0 0.0
        %635 = vmatpush1.msra.mxu0 %v549
        %636 = vmatprep.subr.mxu0 0.0
        %637 = vmatpush2.msra.mxu0 0.0
        %638 = vmatprep.subr.mxu0 0.0
        %639 = vmatpush2.msra.mxu0 0.0
        %640 = vmatprep.subr.mxu0 0.0
        %641 = vmatpush2.msra.mxu0 0.0
        %642 = vmatprep.subr.mxu0 0.0
        %643 = vmatpush2.msra.mxu0 0.0
        %644 = vmatprep.subr.mxu0 0.0
        %645 = vmatpush2.msra.mxu0 0.0
        %646 = vmatprep.subr.mxu0 0.0
        %647 = vmatpush2.msra.mxu0 0.0
        %648 = vmatprep.subr.mxu0 0.0
        %649 = vmatpush2.msra.mxu0 0.0
        %650 = vmatprep.subr.mxu0 0.0
        %651 = vmatpush2.msra.mxu0 0.0
        %652 = vmatprep.subr.mxu0 0.0
        %653 = vmatpush2.msra.mxu0 0.0
        %654 = vmatprep.subr.mxu0 0.0
        %655 = vmatpush2.msra.mxu0 0.0
        %656 = vmatprep.subr.mxu0 0.0
        %657 = vmatpush2.msra.mxu0 0.0
        %658 = vmatprep.subr.mxu0 0.0
        %659 = vmatpush2.msra.mxu0 0.0
        %660 = vmatprep.subr.mxu0 0.0
        %661 = vmatpush2.msra.mxu0 0.0
        %662 = vmatprep.subr.mxu0 0.0
        %663 = vmatpush2.msra.mxu0 0.0
        %664 = vmatprep.subr.mxu0 0.0
        %665 = vmatpush2.msra.mxu0 0.0
        %666 = vmatprep.subr.mxu0 0.0
        %667 = vmatpush2.msra.mxu0 0.0
        %668 = vmatprep.mubr.f32.mxu0 0.0
        %669 = vmatmul.mubr.f32.gmra.mxu0 %v590
        %v670 = vpop.f32.mrf.mxu0
        %v671 = vadd.f32 %v567, %v670
        %v672 = vpop.f32.mrf.mxu0
        %673 = vmatprep.mubr.f32.mxu0 0.0
        %674 = vmatmul.mubr.f32.gmra.mxu0 %v593
        %v675 = vpop.f32.mrf.mxu0
        %v676 = vadd.f32 %v572, %v675
        %v677 = vpop.f32.mrf.mxu0
        %678 = vmatprep.mubr.f32.mxu0 0.0
        %679 = vmatmul.mubr.f32.gmra.mxu0 %v596
        %v680 = vpop.f32.mrf.mxu0
        %v681 = vadd.f32 %v577, %v680
        %v682 = vpop.f32.mrf.mxu0
        %683 = vmatprep.mubr.f32.mxu0 0.0
        %684 = vmatmul.mubr.f32.gmra.mxu0 %v599
        %v685 = vpop.f32.mrf.mxu0
        %v686 = vadd.f32 %v582, %v685
        %v687 = vpop.f32.mrf.mxu0
        %688 = vmatprep.mubr.f32.mxu0 0.0
        %689 = vmatmul.mubr.f32.gmra.mxu0 %v602
        %v690 = vpop.f32.mrf.mxu0
        %v691 = vadd.f32 %v587, %v690
        %v692 = vpop.f32.mrf.mxu0
        %693 = vdwg.mxu0
        %v694 = vtanh.pop %v671
        %v695 = vtanh.pop %v676
        %v696 = vtanh.pop %v681
        %v697 = vtanh.pop %v686
        %v698 = vtanh.pop %v691
        %v699 = vld [vmem:[%s7] sm:$0xff]
        %v700 = vld [vmem:[%s7 + $0x8] sm:$0xff]
        %v701 = vld [vmem:[%s7 + $0x10] sm:$0xff]
        %v702 = vld [vmem:[%s7 + $0x18] sm:$0xff]
        %v703 = vld [vmem:[%s7 + $0x20] sm:$0xff]
        %705 = vset.pattern.permute.xlu0 0
        %706 = vperm.xlu0 %705, %v699
        %v707 = vpop.permute.xlu0 %706
        %710 = vset.pattern.permute.xlu0 0
        %711 = vperm.xlu0 %710, %v700
        %v712 = vpop.permute.xlu0 %711
        %715 = vset.pattern.permute.xlu0 0
        %716 = vperm.xlu0 %715, %v701
        %v717 = vpop.permute.xlu0 %716
        %720 = vset.pattern.permute.xlu0 0
        %721 = vperm.xlu0 %720, %v702
        %v722 = vpop.permute.xlu0 %721
        %725 = vset.pattern.permute.xlu0 0
        %726 = vperm.xlu0 %725, %v703
        %v727 = vpop.permute.xlu0 %726
        %v729 = vmul.f32 %v707, %v694
        %v730 = vmul.f32 %v712, %v695
        %v731 = vmul.f32 %v717, %v696
        %v732 = vmul.f32 %v722, %v697
        %v733 = vmul.f32 %v727, %v698
        %v734 = vadd.f32 %v729, %v730
        %v735 = vadd.f32 %v734, %v731
        %v736 = vadd.f32 %v735, %v732
        %v737 = vadd.f32 %v736, %v733
        %v738 = vrot.slane %v737, 4
        %v739 = vadd.f32 %v737, %v738
        %v740 = vrot.slane %v739, 2
        %v741 = vadd.f32 %v739, %v740
        %v742 = vrot.slane %v741, 1
        %v743 = vadd.f32 %v741, %v742
        %v744 = vld [vmem:[#allocation2] sm:$0x1]
        %746 = vset.pattern.permute.xlu0 0
        %747 = vperm.xlu0 %746, %v744
        %v748 = vpop.permute.xlu0 %747
        %v750 = vlaneseq
        %v751 = vshrl.u32 %v750, 7
        %v752 = vsub.s32 0, %v751
        %v753 = vrot.slane %v748, %v752
        %v754 = vadd.f32 %v743, %v753
        %755 = vst [vmem:[%s322] sm:$0x1] %v754
        %s756 = sand.u32 %s227, 1
        %s757 = scalar_lea.sflag [#allocation4], %s756
        %s758 = sand.u32 %s227, 1
        %s759 = scalar_lea.vmem [#allocation3], %s758
        // Predicated region
        $region57: #{tpu_custom_call.1} parent=55 // pred_check
          %p760 = pneg %p237
        $region58: #{tpu_custom_call.1} parent=55 // pred_check_branch
          %762 = sbr.rel (%p760) target = $region60
        $region59: #{tpu_custom_call.1} parent=55 // pred_region
          %s764 = ssub.s32 16, 16
          %765 = vsyncadd %s757, %s764
          %s766 = smul.addr %s25, 16
          %s767 = scalar_lea.hbm %s9, %s766
          %s769 = sshll.u32 %s759, 4
          %s770 = int_to_ptr.vmem [resolvable:$true] %s769
          %772 = dma.vmem_to_hbm [thread:$0]  %s770, 16, %s767, %s757
        $region60: #{tpu_custom_call.1} parent=55 // pred_fallthru
          _
      $region56: #{tpu_custom_call.1} parent=5 // pred_fallthru
        _
      %p773 = scmp.le.s32.totalorder 2, %s20
      // Predicated region
      $region61: #{tpu_custom_call.1} parent=5 // pred_check
        %p774 = pneg %p773
      $region62: #{tpu_custom_call.1} parent=5 // pred_check_branch
        %776 = sbr.rel (%p774) target = $region64
      $region63: #{tpu_custom_call.1} parent=5 // pred_region
        %s777 = ssub.s32 %s20, 2
        // Predicated region
        $region65: #{tpu_custom_call.1} parent=63 // pred_check
          %p778 = pneg %p243
        $region66: #{tpu_custom_call.1} parent=63 // pred_check_branch
          %780 = sbr.rel (%p778) target = $region68
        $region67: #{tpu_custom_call.1} parent=63 // pred_region
          %s781 = sand.u32 %s228, 1
          %s782 = scalar_lea.sflag [#allocation4], %s781
          %s783 = sand.u32 %s228, 1
          %s784 = scalar_lea.vmem [#allocation3], %s783
          %785 = dma.done %s782, 16
        $region68: #{tpu_custom_call.1} parent=63 // pred_fallthru
          _
      $region64: #{tpu_custom_call.1} parent=5 // pred_fallthru
        _
    $region6: #{tpu_custom_call.1} parent=1 // loop_footer
      %s24 = sadd.s32 1, %s20
    $region7: #{tpu_custom_call.1} parent=1 // loop_footer_branch
      %19 = sbr.rel target = $region3
    $region8: #{tpu_custom_call.1} parent=1 // loop_exit
      _
    %786 = vsyncpa [#allocation4], 1
    %s787 = scalar_lea.sflag [#allocation4], 1
    %788 = vsyncpa %s787, 1

</llo_original>
